<compile_context>
chip_gen: v7x
topology: tpu7x:2x2x1
jax: 0.10.0
libtpu: 0.0.40
codegen_flags: <defaults>
</compile_context>

<pallas_src>
import functools

import jax
import jax.numpy as jnp
from jax.experimental import pallas as pl
from jax.experimental.pallas import tpu as pltpu


def _pick_tile(dim, cap):
    """Largest tile <= cap that divides `dim` (prefer lane/MXU-aligned x128)."""
    if dim <= cap:
        return dim
    for t in range((cap // 128) * 128, 0, -128):
        if dim % t == 0:
            return t
    for t in range(cap, 0, -1):
        if dim % t == 0:
            return t
    return dim


# ----------------------------------------------------------------------------
# Kernel 1: tiled linear projection  y = x @ W^T   (W in PyTorch (N, K) layout)
# ----------------------------------------------------------------------------
def _linear_kernel(x_ref, w_ref, o_ref, acc_ref):
    # x_ref: (tm, tk), w_ref: (tn, tk), o_ref: (tm, tn), acc_ref: (tm, tn) f32
    @pl.when(pl.program_id(2) == 0)
    def _init():
        acc_ref[...] = jnp.zeros_like(acc_ref)

    # Contract the last axes of both operands (== x @ W^T) on the MXU, f32 acc.
    acc_ref[...] += jax.lax.dot_general(
        x_ref[...], w_ref[...],
        dimension_numbers=(((1,), (1,)), ((), ())),
        preferred_element_type=jnp.float32)

    @pl.when(pl.program_id(2) == pl.num_programs(2) - 1)
    def _store():
        o_ref[...] = acc_ref[...].astype(o_ref.dtype)


def linear(x2d, w, *, tm_cap=256, tn_cap=256, tk_cap=512):
    """x2d: (M, K); w: (N, K) PyTorch (out_features, in_features) layout."""
    M, K = x2d.shape
    N, K2 = w.shape
    assert K == K2
    tm = _pick_tile(M, tm_cap)
    tn = _pick_tile(N, tn_cap)
    tk = _pick_tile(K, tk_cap)
    return pl.pallas_call(
        _linear_kernel,
        out_shape=jax.ShapeDtypeStruct((M, N), x2d.dtype),
        grid=(M // tm, N // tn, K // tk),
        in_specs=[
            pl.BlockSpec((tm, tk), lambda i, j, k: (i, k)),
            pl.BlockSpec((tn, tk), lambda i, j, k: (j, k)),
        ],
        out_specs=pl.BlockSpec((tm, tn), lambda i, j, k: (i, j)),
        scratch_shapes=[pltpu.VMEM((tm, tn), jnp.float32)],
        compiler_params=pltpu.CompilerParams(
            dimension_semantics=("parallel", "parallel", "arbitrary")),
    )(x2d, w)


# ----------------------------------------------------------------------------
# Kernel 2: flash-style multi-head attention.  All heads per grid step; output
#           written lane-dense, directly in (B, S, E) layout.
# ----------------------------------------------------------------------------
def _mha_kernel(q_ref, k_ref, v_ref, mask_ref, o_ref,
                m_sc, l_sc, acc_sc, *, n_heads, head_dim, scaling):
    ki = pl.program_id(2)

    @pl.when(ki == 0)
    def _init():
        m_sc[...] = jnp.full_like(m_sc, -jnp.inf)
        l_sc[...] = jnp.zeros_like(l_sc)
        acc_sc[...] = jnp.zeros_like(acc_sc)

    tq = q_ref.shape[1]
    # Scale q (tq*E elems) instead of the (tq, tkv) score matrix.
    q_all = q_ref[0] * scaling                 # (tq, E), native dtype
    k_all = k_ref[0]                           # (tkv, E)
    v_all = v_ref[0]                           # (tkv, E)
    mask = mask_ref[...].astype(jnp.float32)   # (tq, tkv), additive

    pv_cols = []
    alpha_cols = []
    for h in range(n_heads):                   # static unroll over heads
        lo = h * head_dim
        hi = lo + head_dim
        q_h = q_all[:, lo:hi]                  # (tq, D)
        k_h = k_all[:, lo:hi]                  # (tkv, D)
        v_h = v_all[:, lo:hi]                  # (tkv, D)

        # (tq, D) x (tkv, D)^T -> (tq, tkv), f32 accumulation on the MXU.
        s = jax.lax.dot_general(
            q_h, k_h, dimension_numbers=(((1,), (1,)), ((), ())),
            preferred_element_type=jnp.float32)
        s = s + mask

        m_prev = m_sc[h]                                         # (tq, 1)
        m_new = jnp.maximum(m_prev, jnp.max(s, axis=-1, keepdims=True))
        alpha = jnp.exp(m_prev - m_new)                          # (tq, 1)
        p = jnp.exp(s - m_new)                                   # (tq, tkv) f32
        l_sc[h] = alpha * l_sc[h] + jnp.sum(p, axis=-1, keepdims=True)
        m_sc[h] = m_new

        pv_cols.append(jnp.dot(p.astype(v_h.dtype), v_h,
                               preferred_element_type=jnp.float32))   # (tq, D)
        alpha_cols.append(jnp.broadcast_to(alpha, (tq, head_dim)))

    # Single lane-dense read-modify-write of the (tq, E) accumulator per KV step.
    pv_full = jnp.concatenate(pv_cols, axis=-1)        # (tq, E)
    alpha_full = jnp.concatenate(alpha_cols, axis=-1)  # (tq, E)
    acc_sc[...] = alpha_full * acc_sc[...] + pv_full

    @pl.when(ki == pl.num_programs(2) - 1)
    def _finalize():
        inv_cols = [
            jnp.broadcast_to(pl.reciprocal(l_sc[h], approx=True), (tq, head_dim))
            for h in range(n_heads)
        ]
        inv_full = jnp.concatenate(inv_cols, axis=-1)  # (tq, E)
        o_ref[0] = (acc_sc[...] * inv_full).astype(o_ref.dtype)


def attention(q, k, v, mask2d, scaling, n_heads, *, tq_cap=256, tkv_cap=512):
    """q, k, v: (B, S, E) with heads interleaved along E; mask2d: (S, S) additive.
    Returns (B, S, E) with heads interleaved along E (already 'transposed back')."""
    B, S, E = q.shape
    head_dim = E // n_heads
    # Tile caps sized with v7x's 64 MiB VMEM in mind; v5e/v6e (128 MiB) have slack.
    tq = _pick_tile(S, tq_cap)
    tkv = _pick_tile(S, tkv_cap)
    kernel = functools.partial(
        _mha_kernel, n_heads=n_heads, head_dim=head_dim, scaling=scaling)
    return pl.pallas_call(
        kernel,
        out_shape=jax.ShapeDtypeStruct((B, S, E), q.dtype),
        grid=(B, S // tq, S // tkv),
        in_specs=[
            pl.BlockSpec((1, tq, E), lambda b, qi, ki: (b, qi, 0)),
            pl.BlockSpec((1, tkv, E), lambda b, qi, ki: (b, ki, 0)),
            pl.BlockSpec((1, tkv, E), lambda b, qi, ki: (b, ki, 0)),
            pl.BlockSpec((tq, tkv), lambda b, qi, ki: (qi, ki)),
        ],
        out_specs=pl.BlockSpec((1, tq, E), lambda b, qi, ki: (b, qi, 0)),
        scratch_shapes=[
            pltpu.VMEM((n_heads, tq, 1), jnp.float32),   # running max per head
            pltpu.VMEM((n_heads, tq, 1), jnp.float32),   # running sum per head
            pltpu.VMEM((tq, E), jnp.float32),            # un-normalized output
        ],
        compiler_params=pltpu.CompilerParams(
            dimension_semantics=("parallel", "parallel", "arbitrary")),
    )(q, k, v, mask2d)


# ----------------------------------------------------------------------------
# Module wrapper (reshape/slice glue only; no transposes, no weight copies)
# ----------------------------------------------------------------------------
def multi_head_attention(x, params, n_heads, att_mask=None):
    """x: (B, S, E).  params: 'w_qkv' (3E, E) and 'w_out' (E, E), PyTorch layout."""
    B, S, E = x.shape
    head_dim = E // n_heads
    scaling = head_dim ** (-0.5)

    # qkv projection: (B*S, E) x (3E, E)^T -> (B*S, 3E)
    qkv = linear(x.reshape(B * S, E), params["w_qkv"]).reshape(B, S, 3 * E)

    # Contiguous slices; heads stay interleaved along the last axis, matching
    # the PyTorch reshape(B, S, H, D) convention -> no head transposes needed.
    # TODO(synk): at production E (multiple of 128) the attention kernel could
    # read these column ranges of `qkv` directly via its BlockSpecs and skip
    # this slice entirely.
    q = qkv[:, :, :E]
    k = qkv[:, :, E:2 * E]
    v = qkv[:, :, 2 * E:]

    if att_mask is None:
        mask2d = jnp.zeros((S, S), dtype=jnp.float32)
    else:
        # TODO(synk): per-batch / per-head additive masks are not supported;
        # the mask must broadcast from its last two dims (e.g. (S,S), (1,1,S,S)).
        m = jnp.asarray(att_mask)
        if m.ndim > 2:
            m = m.reshape((-1,) + m.shape[-2:])[0]
        mask2d = jnp.broadcast_to(m, (S, S)).astype(jnp.float32)

    # Attention output comes back directly in (B, S, E) layout.
    o = attention(q, k, v, mask2d, scaling, n_heads)

    # Output projection: (B*S, E) x (E, E)^T -> (B*S, E)
    return linear(o.reshape(B * S, E), params["w_out"]).reshape(B, S, E)


# Pure-JAX reference for a sanity check.
def _reference(x, params, n_heads, att_mask=None):
    B, S, E = x.shape
    D = E // n_heads
    qkv = x @ params["w_qkv"].T
    q, k, v = jnp.split(qkv, 3, axis=-1)
    rh = lambda t: t.reshape(B, S, n_heads, D).transpose(0, 2, 1, 3)
    q, k, v = rh(q), rh(k), rh(v)
    dots = jnp.einsum("bhsd,bhtd->bhst", q, k) * (D ** -0.5)
    if att_mask is not None:
        dots = dots + att_mask
    attn = jax.nn.softmax(dots, axis=-1)
    o = jnp.einsum("bhst,bhtd->bhsd", attn, v).transpose(0, 2, 1, 3).reshape(B, S, E)
    return o @ params["w_out"].T


if __name__ == "__main__":
    # Small shapes: batch=2, seq=8, emb=32, heads=4 (head_dim=8)
    B, S, E, H = 2, 8, 32, 4

    key = jax.random.PRNGKey(0)
    k_x, k_qkv, k_out = jax.random.split(key, 3)

    x = jax.random.normal(k_x, (B, S, E), dtype=jnp.float32)
    # Deterministic parameter init (PyTorch-style (out_features, in_features))
    params = {
        "w_qkv": jax.random.normal(k_qkv, (3 * E, E), dtype=jnp.float32) * 0.05,
        "w_out": jax.random.normal(k_out, (E, E), dtype=jnp.float32) * 0.05,
    }
    # Additive attention mask, broadcastable to (B, H, S, S)
    att_mask = jnp.where(
        jnp.tril(jnp.ones((S, S), dtype=bool)), 0.0, -1e9
    ).astype(jnp.float32)[None, None, :, :]

    out = multi_head_attention(x, params, H, att_mask)
    out = jax.block_until_ready(out)

    ref = _reference(x, params, H, att_mask)
    assert out.shape == (B, S, E)
    # Tolerance loosened slightly vs. exact because the softmax normalization
    # uses the hardware approximate reciprocal (pl.reciprocal(approx=True)).
    assert jnp.allclose(out, ref, atol=2e-3, rtol=2e-3)

    print("KERNEL_OK")
</pallas_src>

<mosaic_0001>
module attributes {stable_mosaic.version = 11 : i64} {
  func.func @_linear_kernel(%arg0: i32, %arg1: i32, %arg2: i32, %arg3: memref<16x32xf32, #tpu.memory_space<vmem>>, %arg4: memref<96x32xf32, #tpu.memory_space<vmem>>, %arg5: memref<16x96xf32, #tpu.memory_space<vmem>>, %arg6: memref<16x96xf32, #tpu.memory_space<vmem>>) attributes {dimension_semantics = [#tpu.dimension_semantics<parallel>, #tpu.dimension_semantics<parallel>, #tpu.dimension_semantics<arbitrary>], iteration_bounds = array<i64: 1, 1, 1>, scalar_prefetch = 0 : i64, scratch_operands = 1 : i64, tpu.core_type = #tpu.core_type<tc>, window_params = [{transform_indices = @transform_0, window_bounds = array<i64: 16, 32>}, {transform_indices = @transform_1, window_bounds = array<i64: 96, 32>}, {transform_indices = @transform_2, window_bounds = array<i64: 16, 96>}]} {
    %c0_i32 = arith.constant 0 : i32
    %0 = arith.cmpi eq, %arg2, %c0_i32 : i32
    %1 = arith.extui %0 : i1 to i32
    %c0_i32_0 = arith.constant 0 : i32
    %2 = arith.cmpi ne, %1, %c0_i32_0 : i32
    scf.if %2 {
      %cst_10 = arith.constant 0.000000e+00 : f32
      %12 = vector.broadcast %cst_10 : f32 to vector<16x96xf32>
      %c0_11 = arith.constant 0 : index
      %c0_12 = arith.constant 0 : index
      %13 = vector.load %arg6[%c0_11, %c0_12] : memref<16x96xf32, #tpu.memory_space<vmem>>, vector<16x96xf32>
      tpu.vector_store %arg6[%c0_11, %c0_12], %12 {strides = array<i32>} : memref<16x96xf32, #tpu.memory_space<vmem>>, vector<16x96xf32>,
    } else {
    }
    %c0 = arith.constant 0 : index
    %c0_1 = arith.constant 0 : index
    %3 = vector.load %arg6[%c0, %c0_1] : memref<16x96xf32, #tpu.memory_space<vmem>>, vector<16x96xf32>
    %c0_2 = arith.constant 0 : index
    %c0_3 = arith.constant 0 : index
    %4 = vector.load %arg3[%c0_2, %c0_3] : memref<16x32xf32, #tpu.memory_space<vmem>>, vector<16x32xf32>
    %c0_4 = arith.constant 0 : index
    %c0_5 = arith.constant 0 : index
    %5 = vector.load %arg4[%c0_4, %c0_5] : memref<96x32xf32, #tpu.memory_space<vmem>>, vector<96x32xf32>
    %cst = arith.constant dense<0.000000e+00> : vector<16x96xf32>
    %6 = tpu.matmul %4, %5, %cst {dimension_numbers = #tpu.dot_dimension_numbers<[1], [1], [0], [0], [0, 0, 1, 0], [], []>} : vector<16x32xf32>, vector<96x32xf32>, vector<16x96xf32> -> vector<16x96xf32>
    %7 = arith.addf %3, %6 : vector<16x96xf32>
    %c0_6 = arith.constant 0 : index
    %c0_7 = arith.constant 0 : index
    %8 = vector.load %arg6[%c0_6, %c0_7] : memref<16x96xf32, #tpu.memory_space<vmem>>, vector<16x96xf32>
    tpu.vector_store %arg6[%c0_6, %c0_7], %7 {strides = array<i32>} : memref<16x96xf32, #tpu.memory_space<vmem>>, vector<16x96xf32>,
    %c0_i32_8 = arith.constant 0 : i32
    %9 = arith.cmpi eq, %arg2, %c0_i32_8 : i32
    %10 = arith.extui %9 : i1 to i32
    %c0_i32_9 = arith.constant 0 : i32
    %11 = arith.cmpi ne, %10, %c0_i32_9 : i32
    scf.if %11 {
      %c0_10 = arith.constant 0 : index
      %c0_11 = arith.constant 0 : index
      %12 = vector.load %arg6[%c0_10, %c0_11] : memref<16x96xf32, #tpu.memory_space<vmem>>, vector<16x96xf32>
      %c0_12 = arith.constant 0 : index
      %c0_13 = arith.constant 0 : index
      %13 = vector.load %arg5[%c0_12, %c0_13] : memref<16x96xf32, #tpu.memory_space<vmem>>, vector<16x96xf32>
      tpu.vector_store %arg5[%c0_12, %c0_13], %12 {strides = array<i32>} : memref<16x96xf32, #tpu.memory_space<vmem>>, vector<16x96xf32>,
    } else {
    }
    return
  }
  func.func @transform_0(%arg0: i32, %arg1: i32, %arg2: i32) -> (i32, i32) {
    %c0_i32 = arith.constant 0 : i32
    return %arg0, %arg2 : i32, i32
  }
  func.func @transform_1(%arg0: i32, %arg1: i32, %arg2: i32) -> (i32, i32) {
    %c0_i32 = arith.constant 0 : i32
    return %arg1, %arg2 : i32, i32
  }
  func.func @transform_2(%arg0: i32, %arg1: i32, %arg2: i32) -> (i32, i32) {
    %c0_i32 = arith.constant 0 : i32
    return %arg0, %arg1 : i32, i32
  }
}

</mosaic_0001>

<llo_original>
// kernel: tpu_custom_call.1
$region0: #{tpu_custom_call.1}
  #allocation0 [shape = 'u32[]', space=smem, size = 0x4, offset = 0x4, fixed_abs, tag = 'smem constant byte address 0x4 - core index']
  #allocation1 [shape = 'u32[144,128]{1,0:T(1,128)}', space=vmem, size = 0x12000, scoped, tag = 'internal scratch']
  #allocation2 [shape = 'f32[16,96]{1,0:T(8,128)}', space=vmem, size = 0x2000, scoped, tag = 'scratch operand']
  %s0 = inlined_call_operand.vmem [shape: f32[16,32], index: 0, kind: input, shape index: {}]
  %s1 = inlined_call_operand.vmem [shape: f32[96,32], index: 1, kind: input, shape index: {}]
  %s2 = inlined_call_operand.hbm [shape: f32[16,96], index: 2, kind: output, shape index: {}]
  %s3 = sld [smem:[#allocation0]]
  $region26: #{tpu_custom_call.1} parent=0
    _
  %s5 = ssub.s32 1, %s3
  %s6 = scalar_select 0, %s5, %s3
  $region1: #{tpu_custom_call.1} parent=0
    #allocation3 [shape = 'u8[8192]{0}', space=vmem, size = 0x2000, scoped, tag = 'output window, operand 0, single buffered']
    #allocation4 [shape = 's32[1]{0}', space=sflag, size = 0x4, scoped, tag = 'scoped memory for tpu_custom_call.1']
    %7 = vsyncpa [#allocation4], 0
    // Predicated region
    $region2: #{tpu_custom_call.1} parent=1 // pred_check
      _
    $region3: #{tpu_custom_call.1} parent=1 // pred_check_branch
      %9 = sbr.rel (0) target = $region5
    $region4: #{tpu_custom_call.1} parent=1 // pred_region
      _
    $region5: #{tpu_custom_call.1} parent=1 // pred_fallthru
      _
    // Predicated region
    $region6: #{tpu_custom_call.1} parent=1 // pred_check
      _
    $region7: #{tpu_custom_call.1} parent=1 // pred_check_branch
      %11 = sbr.rel (0) target = $region9
    $region8: #{tpu_custom_call.1} parent=1 // pred_region
      _
    $region9: #{tpu_custom_call.1} parent=1 // pred_fallthru
      _
    %p12 = scmp.eq.s32.totalorder 0, 0
    // Predicated region
    $region10: #{tpu_custom_call.1} parent=1 // pred_check
      %p13 = pneg %p12
    $region11: #{tpu_custom_call.1} parent=1 // pred_check_branch
      %15 = sbr.rel (%p13) target = $region13
    $region12: #{tpu_custom_call.1} parent=1 // pred_region
      %vm16 = vcmask 785408
      %17 = vst.msk [vmem:[#allocation2] sm:$0xff] %vm16, 0.0
      %18 = vst.msk [vmem:[#allocation2 + $0x8] sm:$0xff] %vm16, 0.0
    $region13: #{tpu_custom_call.1} parent=1 // pred_fallthru
      _
    %v19 = vld [vmem:[#allocation2] sm:$0xff]
    %v20 = vld [vmem:[#allocation2 + $0x8] sm:$0xff]
    %v21 = vld [vmem:[%s0] sm:$0xff]
    %v22 = vld [vmem:[%s0 + $0x8] sm:$0xff]
    %v23 = vld [vmem:[%s1] sm:$0xff]
    %v24 = vld [vmem:[%s1 + $0x8] sm:$0xff]
    %v25 = vld [vmem:[%s1 + $0x10] sm:$0xff]
    %v26 = vld [vmem:[%s1 + $0x18] sm:$0xff]
    %v27 = vld [vmem:[%s1 + $0x20] sm:$0xff]
    %v28 = vld [vmem:[%s1 + $0x28] sm:$0xff]
    %v29 = vld [vmem:[%s1 + $0x30] sm:$0xff]
    %v30 = vld [vmem:[%s1 + $0x38] sm:$0xff]
    %v31 = vld [vmem:[%s1 + $0x40] sm:$0xff]
    %v32 = vld [vmem:[%s1 + $0x48] sm:$0xff]
    %v33 = vld [vmem:[%s1 + $0x50] sm:$0xff]
    %v34 = vld [vmem:[%s1 + $0x58] sm:$0xff]
    %vm35 = vcmask 261120
    %v37 = vsel %vm35, %v21, 0
    %v40 = vsel %vm35, %v22, 0
    %v43 = vsel %vm35, %v23, 0
    %v46 = vsel %vm35, %v24, 0
    %v49 = vsel %vm35, %v25, 0
    %v52 = vsel %vm35, %v26, 0
    %v55 = vsel %vm35, %v27, 0
    %v58 = vsel %vm35, %v28, 0
    %v61 = vsel %vm35, %v29, 0
    %v64 = vsel %vm35, %v30, 0
    %v67 = vsel %vm35, %v31, 0
    %v70 = vsel %vm35, %v32, 0
    %v73 = vsel %vm35, %v33, 0
    %v76 = vsel %vm35, %v34, 0
    %78 = vmatprep.subr.mxu0 0.0
    %79 = vmatpush1.xpose.msra.mxu0 %v43
    %80 = vmatprep.subr.mxu0 0.0
    %81 = vmatpush1.xpose.msra.mxu0 %v46
    %82 = vmatprep.subr.mxu0 0.0
    %83 = vmatpush1.xpose.msra.mxu0 %v49
    %84 = vmatprep.subr.mxu0 0.0
    %85 = vmatpush1.xpose.msra.mxu0 %v52
    %86 = vmatprep.subr.mxu0 0.0
    %87 = vmatpush1.xpose.msra.mxu0 %v55
    %88 = vmatprep.subr.mxu0 0.0
    %89 = vmatpush1.xpose.msra.mxu0 %v58
    %90 = vmatprep.subr.mxu0 0.0
    %91 = vmatpush1.xpose.msra.mxu0 %v61
    %92 = vmatprep.subr.mxu0 0.0
    %93 = vmatpush1.xpose.msra.mxu0 %v64
    %94 = vmatprep.subr.mxu0 0.0
    %95 = vmatpush1.xpose.msra.mxu0 %v67
    %96 = vmatprep.subr.mxu0 0.0
    %97 = vmatpush1.xpose.msra.mxu0 %v70
    %98 = vmatprep.subr.mxu0 0.0
    %99 = vmatpush1.xpose.msra.mxu0 %v73
    %100 = vmatprep.subr.mxu0 0.0
    %101 = vmatpush1.xpose.msra.mxu0 %v76
    %102 = vmatprep.subr.mxu0 0.0
    %103 = vmatpush1.xpose.msra.mxu0 0.0
    %104 = vmatprep.subr.mxu0 0.0
    %105 = vmatpush1.xpose.msra.mxu0 0.0
    %106 = vmatprep.subr.mxu0 0.0
    %107 = vmatpush1.xpose.msra.mxu0 0.0
    %108 = vmatprep.subr.mxu0 0.0
    %109 = vmatpush1.xpose.msra.mxu0 0.0
    %110 = vmatprep.subr.mxu0 0.0
    %111 = vmatpush1.xpose.msra.mxu0 0.0
    %112 = vmatprep.subr.mxu0 0.0
    %113 = vmatpush1.xpose.msra.mxu0 0.0
    %114 = vmatprep.subr.mxu0 0.0
    %115 = vmatpush1.xpose.msra.mxu0 0.0
    %116 = vmatprep.subr.mxu0 0.0
    %117 = vmatpush1.xpose.msra.mxu0 0.0
    %118 = vmatprep.subr.mxu0 0.0
    %119 = vmatpush1.xpose.msra.mxu0 0.0
    %120 = vmatprep.subr.mxu0 0.0
    %121 = vmatpush1.xpose.msra.mxu0 0.0
    %122 = vmatprep.subr.mxu0 0.0
    %123 = vmatpush1.xpose.msra.mxu0 0.0
    %124 = vmatprep.subr.mxu0 0.0
    %125 = vmatpush1.xpose.msra.mxu0 0.0
    %126 = vmatprep.subr.mxu0 0.0
    %127 = vmatpush1.xpose.msra.mxu0 0.0
    %128 = vmatprep.subr.mxu0 0.0
    %129 = vmatpush1.xpose.msra.mxu0 0.0
    %130 = vmatprep.subr.mxu0 0.0
    %131 = vmatpush1.xpose.msra.mxu0 0.0
    %132 = vmatprep.subr.mxu0 0.0
    %133 = vmatpush1.xpose.msra.mxu0 0.0
    %134 = vmatprep.subr.mxu0 0.0
    %135 = vmatpush1.xpose.msra.mxu0 0.0
    %136 = vmatprep.subr.mxu0 0.0
    %137 = vmatpush1.xpose.msra.mxu0 0.0
    %138 = vmatprep.subr.mxu0 0.0
    %139 = vmatpush1.xpose.msra.mxu0 0.0
    %140 = vmatprep.subr.mxu0 0.0
    %141 = vmatpush1.xpose.msra.mxu0 0.0
    %142 = vmatprep.mubr.f32.mxu0 0.0
    %143 = vmatmul.mubr.f32.gmra.mrb[0].mxu0 %v37
    %v144 = vpop.f32.mrb[0].mxu0
    %v145 = vadd.f32 0.0, %v144
    %v146 = vpop.f32.mrb[0].mxu0
    %147 = vmatprep.mubr.f32.mxu0 0.0
    %148 = vmatmul.mubr.f32.gmra.mrb[0].mxu0 %v40
    %v149 = vpop.f32.mrb[0].mxu0
    %v150 = vadd.f32 0.0, %v149
    %v151 = vpop.f32.mrb[0].mxu0
    %152 = vdwg.mxu0
    %v153 = vadd.f32 %v19, %v145
    %v154 = vadd.f32 %v20, %v150
    %vm155 = vcmask 785408
    %156 = vst.msk [vmem:[#allocation2] sm:$0xff] %vm155, %v153
    %157 = vst.msk [vmem:[#allocation2 + $0x8] sm:$0xff] %vm155, %v154
    // Predicated region
    $region14: #{tpu_custom_call.1} parent=1 // pred_check
      %p158 = pneg %p12
    $region15: #{tpu_custom_call.1} parent=1 // pred_check_branch
      %160 = sbr.rel (%p158) target = $region17
    $region16: #{tpu_custom_call.1} parent=1 // pred_region
      %v161 = vld [vmem:[#allocation2] sm:$0xff]
      %v162 = vld [vmem:[#allocation2 + $0x8] sm:$0xff]
      %163 = vst.msk [vmem:[#allocation3] sm:$0xff] %vm155, %v161
      %164 = vst.msk [vmem:[#allocation3 + $0x8] sm:$0xff] %vm155, %v162
    $region17: #{tpu_custom_call.1} parent=1 // pred_fallthru
      _
    // Predicated region
    $region18: #{tpu_custom_call.1} parent=1 // pred_check
      _
    $region19: #{tpu_custom_call.1} parent=1 // pred_check_branch
      %166 = sbr.rel (0) target = $region21
    $region20: #{tpu_custom_call.1} parent=1 // pred_region
      %s168 = ssub.s32 256, 256
      %169 = vsyncadd [#allocation4], %s168
      %s170 = sshll.u32 [#allocation3], 4
      %s171 = int_to_ptr.vmem [resolvable:$true] %s170
      %176 = dma.vmem_to_hbm [thread:$0]  %s171, 256, %s2, [#allocation4], 128, 128, 8
    $region21: #{tpu_custom_call.1} parent=1 // pred_fallthru
      _
    // Predicated region
    $region22: #{tpu_custom_call.1} parent=1 // pred_check
      _
    $region23: #{tpu_custom_call.1} parent=1 // pred_check_branch
      %178 = sbr.rel (0) target = $region25
    $region24: #{tpu_custom_call.1} parent=1 // pred_region
      %179 = dma.done [#allocation4], 256
    $region25: #{tpu_custom_call.1} parent=1 // pred_fallthru
      _
    %180 = vsyncpa [#allocation4], 1

</llo_original>
